<compile_context>
chip_gen: v5e
topology: v5e:2x2
jax: 0.10.0
libtpu: 0.0.40
codegen_flags: <defaults>
</compile_context>

<pallas_src>
import functools

import jax
import jax.numpy as jnp
from jax import lax
from jax.experimental import pallas as pl
from jax.experimental.pallas import tpu as pltpu


def _cross_attention_kernel(x_ref, c_ref, wq_ref, wk_ref, wv_ref, wo_ref, bo_ref,
                            o_ref, k_scr, v_scr, *, heads, dim_head, scale):
    cdt = x_ref.dtype  # narrow MXU-operand dtype (bf16-native when inputs are bf16)

    # --- K/V projection: once per batch (query-tile axis is 'arbitrary'); cached
    #     in VMEM scratch in the narrow dtype and reused by every query tile. ---
    @pl.when(pl.program_id(1) == 0)
    def _():
        c = c_ref[0]                                                    # (M, Dc)
        k_scr[...] = jnp.dot(c, wk_ref[...],
                             preferred_element_type=jnp.float32).astype(k_scr.dtype)
        v_scr[...] = jnp.dot(c, wv_ref[...],
                             preferred_element_type=jnp.float32).astype(v_scr.dtype)

    # --- Q projection for this query tile; scale applied once, then narrowed. ---
    x = x_ref[0]                                                        # (n_tile, Dq)
    q = (jnp.dot(x, wq_ref[...], preferred_element_type=jnp.float32)
         * scale).astype(cdt)                                           # (n_tile, inner)

    n_tile = x.shape[0]
    dq_out = o_ref.shape[-1]
    # Bias added once; f32 accumulator for the fused per-head output projection.
    acc = jnp.broadcast_to(bo_ref[...].astype(jnp.float32), (n_tile, dq_out))

    for h in range(heads):                      # compile-time unrolled over heads
        lo = h * dim_head
        qh = q[:, lo:lo + dim_head]                                     # (n_tile, dh)
        kh = k_scr[:, lo:lo + dim_head]                                 # (M, dh)
        vh = v_scr[:, lo:lo + dim_head]                                 # (M, dh)

        # q @ k^T by contracting the last dims of both operands (no XLU transpose);
        # narrow operands, f32 accumulation.
        s = lax.dot_general(qh, kh, (((1,), (1,)), ((), ())),
                            preferred_element_type=jnp.float32)         # (n_tile, M)
        # fp32 softmax (matches _ATTN_PRECISION='fp32'); EUP reciprocal.
        s = s - jnp.max(s, axis=-1, keepdims=True)
        p = jnp.exp(s)
        p = p * pl.reciprocal(jnp.sum(p, axis=-1, keepdims=True), approx=True)

        pv = jnp.dot(p.astype(cdt), vh, preferred_element_type=jnp.float32)
        # Fused per-head output projection: lane-dense at Dq, no head concat.
        acc = acc + jnp.dot(pv.astype(cdt), wo_ref[lo:lo + dim_head, :],
                            preferred_element_type=jnp.float32)

    o_ref[0] = acc.astype(o_ref.dtype)


def _vmem_capacity_bytes():
    try:
        cap = int(pltpu.get_tpu_info().vmem_capacity_bytes)
        if cap > 0:
            return cap
    except Exception:
        pass
    return 64 * 1024 * 1024   # conservative default (v7x per-TensorCore VMEM)


def _pick_n_tile(N, M, dq_in, dq_out, dc, inner, itemsize, budget_bytes):
    """Largest query tile whose per-step working set fits the VMEM budget."""
    fixed = 2 * (dq_in * inner + 2 * dc * inner
                 + inner * dq_out + dq_out) * itemsize      # weights + bias (2-deep)
    fixed += 2 * M * dc * itemsize                           # context block (2-deep)
    fixed += 2 * M * inner * itemsize                        # cached K/V scratch
    per_row = 2 * (dq_in + dq_out) * itemsize                # x tile + out tile (2-deep)
    per_row += inner * itemsize                              # q operand
    per_row += 2 * M * 4                                     # score + prob rows (f32)
    per_row += (inner + dq_out) * 4                          # pv + f32 accumulator
    cap_rows = max(8, (budget_bytes - fixed) // max(per_row, 1))
    cap_rows = int(min(cap_rows, 1024, N))
    # Largest divisor of N <= cap that keeps the sublane dim 8-aligned (or == N).
    for t in range(cap_rows, 0, -1):
        if N % t == 0 and (t % 8 == 0 or t == N):
            return t
    return N


def cross_attention_pallas(x, context, wq, wk, wv, wo, bo, *, heads, dim_head,
                           n_tile=None):
    B, N, Dq = x.shape
    _, M, Dc = context.shape
    inner = heads * dim_head
    assert wq.shape == (Dq, inner) and wk.shape == (Dc, inner)
    assert wv.shape == (Dc, inner) and wo.shape == (inner, Dq)
    assert bo.shape == (Dq,)
    scale = dim_head ** (-0.5)

    # Pad the output channel dim to a lane-dense multiple of 128 (unmasked vst);
    # padded weight columns / bias entries are zero, sliced off after the call.
    Dq_pad = ((Dq + 127) // 128) * 128
    if Dq_pad != Dq:
        wo = jnp.pad(wo, ((0, 0), (0, Dq_pad - Dq)))
        bo = jnp.pad(bo, (0, Dq_pad - Dq))
    bo_2d = bo.reshape(1, Dq_pad)

    vmem_budget = (_vmem_capacity_bytes() * 3) // 4          # leave headroom
    if n_tile is None:
        n_tile = _pick_n_tile(N, M, Dq, Dq_pad, Dc, inner,
                              jnp.dtype(x.dtype).itemsize, vmem_budget)
    assert N % n_tile == 0, "query tile size must divide N"
    n_tiles = N // n_tile

    kernel = functools.partial(_cross_attention_kernel,
                               heads=heads, dim_head=dim_head, scale=scale)

    out = pl.pallas_call(
        kernel,
        out_shape=jax.ShapeDtypeStruct((B, N, Dq_pad), x.dtype),
        grid_spec=pltpu.PrefetchScalarGridSpec(
            num_scalar_prefetch=0,
            grid=(B, n_tiles),
            in_specs=[
                pl.BlockSpec((1, n_tile, Dq), lambda b, n: (b, n, 0)),   # x tile
                pl.BlockSpec((1, M, Dc), lambda b, n: (b, 0, 0)),        # context
                pl.BlockSpec((Dq, inner), lambda b, n: (0, 0)),          # Wq (resident)
                pl.BlockSpec((Dc, inner), lambda b, n: (0, 0)),          # Wk
                pl.BlockSpec((Dc, inner), lambda b, n: (0, 0)),          # Wv
                pl.BlockSpec((inner, Dq_pad), lambda b, n: (0, 0)),      # Wo (padded)
                pl.BlockSpec((1, Dq_pad), lambda b, n: (0, 0)),          # bias
            ],
            out_specs=pl.BlockSpec((1, n_tile, Dq_pad), lambda b, n: (b, n, 0)),
            scratch_shapes=[
                pltpu.VMEM((M, inner), x.dtype),   # cached K (narrow dtype)
                pltpu.VMEM((M, inner), x.dtype),   # cached V (narrow dtype)
            ],
        ),
        compiler_params=pltpu.CompilerParams(
            dimension_semantics=("parallel", "arbitrary"),
            vmem_limit_bytes=int(vmem_budget)),
    )(x, context, wq, wk, wv, wo, bo_2d)

    if Dq_pad != Dq:
        out = out[..., :Dq]
    return out


def cross_attention_ref(x, context, wq, wk, wv, wo, bo, *, heads, dim_head):
    """Pure-JAX reference mirroring the PyTorch forward (eval mode, fp32 softmax)."""
    B, N, Dq = x.shape
    q = x @ wq
    k = context @ wk
    v = context @ wv

    def split_heads(t):
        b, n, _ = t.shape
        return t.reshape(b, n, heads, dim_head).transpose(0, 2, 1, 3).reshape(
            b * heads, n, dim_head)

    q, k, v = map(split_heads, (q, k, v))
    attn = jnp.einsum('bid,bjd->bij', q.astype(jnp.float32),
                      k.astype(jnp.float32)) * dim_head ** (-0.5)
    attn = jax.nn.softmax(attn, axis=-1)
    out = jnp.einsum('bij,bjd->bid', attn, v.astype(jnp.float32))
    out = out.reshape(B, heads, N, dim_head).transpose(0, 2, 1, 3).reshape(
        B, N, heads * dim_head)
    return out @ wo + bo


if __name__ == "__main__":
    # Small, module-consistent shapes.
    B, N = 2, 8
    query_dim = 32
    heads, dim_head = 2, 16
    inner_dim = heads * dim_head
    context_dim = query_dim  # forward() with context=None → context = x

    key = jax.random.PRNGKey(0)
    kx, kq, kk, kv, ko, kb = jax.random.split(key, 6)

    x = jax.random.normal(kx, (B, N, query_dim), dtype=jnp.float32)
    context = x

    # Deterministic parameter init (math layout: (in_features, out_features)).
    wq = 0.1 * jax.random.normal(kq, (query_dim, inner_dim), dtype=jnp.float32)
    wk = 0.1 * jax.random.normal(kk, (context_dim, inner_dim), dtype=jnp.float32)
    wv = 0.1 * jax.random.normal(kv, (context_dim, inner_dim), dtype=jnp.float32)
    wo = 0.1 * jax.random.normal(ko, (inner_dim, query_dim), dtype=jnp.float32)
    bo = 0.1 * jax.random.normal(kb, (query_dim,), dtype=jnp.float32)

    out = cross_attention_pallas(x, context, wq, wk, wv, wo, bo,
                                 heads=heads, dim_head=dim_head)
    out = jax.block_until_ready(out)

    ref = cross_attention_ref(x, context, wq, wk, wv, wo, bo,
                              heads=heads, dim_head=dim_head)
    assert out.shape == (B, N, query_dim)
    # approx=True reciprocal in the softmax denominator → slightly looser tolerance.
    assert jnp.allclose(out, ref, atol=2e-3, rtol=2e-3), "mismatch vs reference"

    print("KERNEL_OK")
</pallas_src>

<mosaic_0001>
module attributes {stable_mosaic.version = 11 : i64} {
  func.func @_cross_attention_kernel(%arg0: i32, %arg1: i32, %arg2: memref<1x8x32xf32, #tpu.memory_space<vmem>>, %arg3: memref<1x8x32xf32, #tpu.memory_space<vmem>>, %arg4: memref<32x32xf32, #tpu.memory_space<vmem>>, %arg5: memref<32x32xf32, #tpu.memory_space<vmem>>, %arg6: memref<32x32xf32, #tpu.memory_space<vmem>>, %arg7: memref<32x128xf32, #tpu.memory_space<vmem>>, %arg8: memref<1x128xf32, #tpu.memory_space<vmem>>, %arg9: memref<1x8x128xf32, #tpu.memory_space<vmem>>, %arg10: memref<8x32xf32, #tpu.memory_space<vmem>>, %arg11: memref<8x32xf32, #tpu.memory_space<vmem>>) attributes {dimension_semantics = [#tpu.dimension_semantics<parallel>, #tpu.dimension_semantics<arbitrary>], iteration_bounds = array<i64: 2, 1>, scalar_prefetch = 0 : i64, scratch_operands = 2 : i64, tpu.core_type = #tpu.core_type<tc>, window_params = [{transform_indices = @transform_0, window_bounds = array<i64: 1, 8, 32>}, {transform_indices = @transform_1, window_bounds = array<i64: 1, 8, 32>}, {pipeline_mode = #tpu.pipeline_mode<synchronous>, transform_indices = @transform_2, window_bounds = array<i64: 32, 32>}, {pipeline_mode = #tpu.pipeline_mode<synchronous>, transform_indices = @transform_3, window_bounds = array<i64: 32, 32>}, {pipeline_mode = #tpu.pipeline_mode<synchronous>, transform_indices = @transform_4, window_bounds = array<i64: 32, 32>}, {pipeline_mode = #tpu.pipeline_mode<synchronous>, transform_indices = @transform_5, window_bounds = array<i64: 32, 128>}, {pipeline_mode = #tpu.pipeline_mode<synchronous>, transform_indices = @transform_6, window_bounds = array<i64: 1, 128>}, {transform_indices = @transform_7, window_bounds = array<i64: 1, 8, 128>}]} {
    %c0_i32 = arith.constant 0 : i32
    %0 = arith.cmpi eq, %arg1, %c0_i32 : i32
    %1 = arith.extui %0 : i1 to i32
    %c0_i32_0 = arith.constant 0 : i32
    %2 = arith.cmpi ne, %1, %c0_i32_0 : i32
    scf.if %2 {
      %c0_32 = arith.constant 0 : index
      %c0_33 = arith.constant 0 : index
      %c0_34 = arith.constant 0 : index
      %51 = vector.load %arg3[%c0_32, %c0_33, %c0_34] : memref<1x8x32xf32, #tpu.memory_space<vmem>>, vector<1x8x32xf32>
      %52 = vector.shape_cast %51 : vector<1x8x32xf32> to vector<8x32xf32>
      %c0_35 = arith.constant 0 : index
      %c0_36 = arith.constant 0 : index
      %53 = vector.load %arg5[%c0_35, %c0_36] : memref<32x32xf32, #tpu.memory_space<vmem>>, vector<32x32xf32>
      %cst_37 = arith.constant dense<0.000000e+00> : vector<8x32xf32>
      %54 = tpu.matmul %52, %53, %cst_37 {dimension_numbers = #tpu.dot_dimension_numbers<[1], [0], [0], [1], [0, 0, 1, 1], [], []>} : vector<8x32xf32>, vector<32x32xf32>, vector<8x32xf32> -> vector<8x32xf32>
      %c0_38 = arith.constant 0 : index
      %c0_39 = arith.constant 0 : index
      %55 = vector.load %arg10[%c0_38, %c0_39] : memref<8x32xf32, #tpu.memory_space<vmem>>, vector<8x32xf32>
      tpu.vector_store %arg10[%c0_38, %c0_39], %54 {strides = array<i32>} : memref<8x32xf32, #tpu.memory_space<vmem>>, vector<8x32xf32>,
      %c0_40 = arith.constant 0 : index
      %c0_41 = arith.constant 0 : index
      %56 = vector.load %arg6[%c0_40, %c0_41] : memref<32x32xf32, #tpu.memory_space<vmem>>, vector<32x32xf32>
      %cst_42 = arith.constant dense<0.000000e+00> : vector<8x32xf32>
      %57 = tpu.matmul %52, %56, %cst_42 {dimension_numbers = #tpu.dot_dimension_numbers<[1], [0], [0], [1], [0, 0, 1, 1], [], []>} : vector<8x32xf32>, vector<32x32xf32>, vector<8x32xf32> -> vector<8x32xf32>
      %c0_43 = arith.constant 0 : index
      %c0_44 = arith.constant 0 : index
      %58 = vector.load %arg11[%c0_43, %c0_44] : memref<8x32xf32, #tpu.memory_space<vmem>>, vector<8x32xf32>
      tpu.vector_store %arg11[%c0_43, %c0_44], %57 {strides = array<i32>} : memref<8x32xf32, #tpu.memory_space<vmem>>, vector<8x32xf32>,
    } else {
    }
    %c0 = arith.constant 0 : index
    %c0_1 = arith.constant 0 : index
    %c0_2 = arith.constant 0 : index
    %3 = vector.load %arg2[%c0, %c0_1, %c0_2] : memref<1x8x32xf32, #tpu.memory_space<vmem>>, vector<1x8x32xf32>
    %4 = vector.shape_cast %3 : vector<1x8x32xf32> to vector<8x32xf32>
    %c0_3 = arith.constant 0 : index
    %c0_4 = arith.constant 0 : index
    %5 = vector.load %arg4[%c0_3, %c0_4] : memref<32x32xf32, #tpu.memory_space<vmem>>, vector<32x32xf32>
    %cst = arith.constant dense<0.000000e+00> : vector<8x32xf32>
    %6 = tpu.matmul %4, %5, %cst {dimension_numbers = #tpu.dot_dimension_numbers<[1], [0], [0], [1], [0, 0, 1, 1], [], []>} : vector<8x32xf32>, vector<32x32xf32>, vector<8x32xf32> -> vector<8x32xf32>
    %cst_5 = arith.constant 2.500000e-01 : f32
    %7 = vector.broadcast %cst_5 : f32 to vector<8x32xf32>
    %8 = arith.mulf %6, %7 : vector<8x32xf32>
    %c0_6 = arith.constant 0 : index
    %c0_7 = arith.constant 0 : index
    %9 = vector.load %arg8[%c0_6, %c0_7] : memref<1x128xf32, #tpu.memory_space<vmem>>, vector<1x128xf32>
    %10 = vector.shape_cast %9 : vector<1x128xf32> to vector<1x128xf32>
    %11 = vector.broadcast %10 : vector<1x128xf32> to vector<8x128xf32>
    %12 = vector.extract_strided_slice %8 {offsets = [0, 0], sizes = [8, 16], strides = [1, 1]} : vector<8x32xf32> to vector<8x16xf32>
    %c0_8 = arith.constant 0 : index
    %c0_9 = arith.constant 0 : index
    %13 = vector.load %arg10[%c0_8, %c0_9] : memref<8x32xf32, #tpu.memory_space<vmem>>, vector<8x16xf32>
    %c0_10 = arith.constant 0 : index
    %c0_11 = arith.constant 0 : index
    %14 = vector.load %arg11[%c0_10, %c0_11] : memref<8x32xf32, #tpu.memory_space<vmem>>, vector<8x16xf32>
    %cst_12 = arith.constant dense<0.000000e+00> : vector<8x8xf32>
    %15 = tpu.matmul %12, %13, %cst_12 {dimension_numbers = #tpu.dot_dimension_numbers<[1], [1], [0], [0], [0, 0, 1, 0], [], []>} : vector<8x16xf32>, vector<8x16xf32>, vector<8x8xf32> -> vector<8x8xf32>
    %cst_13 = arith.constant dense<0xFF800000> : vector<8xf32>
    %16 = vector.multi_reduction <maximumf>, %15, %cst_13 [1] : vector<8x8xf32> to vector<8xf32>
    %17 = vector.shape_cast %16 : vector<8xf32> to vector<8x1xf32>
    %18 = vector.broadcast %17 : vector<8x1xf32> to vector<8x8xf32>
    %19 = arith.subf %15, %18 : vector<8x8xf32>
    %20 = math.exp %19 : vector<8x8xf32>
    %cst_14 = arith.constant dense<0.000000e+00> : vector<8xf32>
    %21 = vector.multi_reduction <add>, %20, %cst_14 [1] : vector<8x8xf32> to vector<8xf32>
    %22 = vector.shape_cast %21 : vector<8xf32> to vector<8x1xf32>
    %23 = tpu.reciprocal %22 {approx = true} : vector<8x1xf32> -> vector<8x1xf32>
    %24 = vector.broadcast %23 : vector<8x1xf32> to vector<8x8xf32>
    %25 = arith.mulf %20, %24 : vector<8x8xf32>
    %cst_15 = arith.constant dense<0.000000e+00> : vector<8x16xf32>
    %26 = tpu.matmul %25, %14, %cst_15 {dimension_numbers = #tpu.dot_dimension_numbers<[1], [0], [0], [1], [0, 0, 1, 1], [], []>} : vector<8x8xf32>, vector<8x16xf32>, vector<8x16xf32> -> vector<8x16xf32>
    %c0_16 = arith.constant 0 : index
    %c0_17 = arith.constant 0 : index
    %27 = vector.load %arg7[%c0_16, %c0_17] : memref<32x128xf32, #tpu.memory_space<vmem>>, vector<16x128xf32>
    %cst_18 = arith.constant dense<0.000000e+00> : vector<8x128xf32>
    %28 = tpu.matmul %26, %27, %cst_18 {dimension_numbers = #tpu.dot_dimension_numbers<[1], [0], [0], [1], [0, 0, 1, 1], [], []>} : vector<8x16xf32>, vector<16x128xf32>, vector<8x128xf32> -> vector<8x128xf32>
    %29 = arith.addf %11, %28 : vector<8x128xf32>
    %30 = vector.extract_strided_slice %8 {offsets = [0, 16], sizes = [8, 16], strides = [1, 1]} : vector<8x32xf32> to vector<8x16xf32>
    %c0_19 = arith.constant 0 : index
    %c16 = arith.constant 16 : index
    %31 = vector.load %arg10[%c0_19, %c16] : memref<8x32xf32, #tpu.memory_space<vmem>>, vector<8x16xf32>
    %c0_20 = arith.constant 0 : index
    %c16_21 = arith.constant 16 : index
    %32 = vector.load %arg11[%c0_20, %c16_21] : memref<8x32xf32, #tpu.memory_space<vmem>>, vector<8x16xf32>
    %cst_22 = arith.constant dense<0.000000e+00> : vector<8x8xf32>
    %33 = tpu.matmul %30, %31, %cst_22 {dimension_numbers = #tpu.dot_dimension_numbers<[1], [1], [0], [0], [0, 0, 1, 0], [], []>} : vector<8x16xf32>, vector<8x16xf32>, vector<8x8xf32> -> vector<8x8xf32>
    %cst_23 = arith.constant dense<0xFF800000> : vector<8xf32>
    %34 = vector.multi_reduction <maximumf>, %33, %cst_23 [1] : vector<8x8xf32> to vector<8xf32>
    %35 = vector.shape_cast %34 : vector<8xf32> to vector<8x1xf32>
    %36 = vector.broadcast %35 : vector<8x1xf32> to vector<8x8xf32>
    %37 = arith.subf %33, %36 : vector<8x8xf32>
    %38 = math.exp %37 : vector<8x8xf32>
    %cst_24 = arith.constant dense<0.000000e+00> : vector<8xf32>
    %39 = vector.multi_reduction <add>, %38, %cst_24 [1] : vector<8x8xf32> to vector<8xf32>
    %40 = vector.shape_cast %39 : vector<8xf32> to vector<8x1xf32>
    %41 = tpu.reciprocal %40 {approx = true} : vector<8x1xf32> -> vector<8x1xf32>
    %42 = vector.broadcast %41 : vector<8x1xf32> to vector<8x8xf32>
    %43 = arith.mulf %38, %42 : vector<8x8xf32>
    %cst_25 = arith.constant dense<0.000000e+00> : vector<8x16xf32>
    %44 = tpu.matmul %43, %32, %cst_25 {dimension_numbers = #tpu.dot_dimension_numbers<[1], [0], [0], [1], [0, 0, 1, 1], [], []>} : vector<8x8xf32>, vector<8x16xf32>, vector<8x16xf32> -> vector<8x16xf32>
    %c16_26 = arith.constant 16 : index
    %c0_27 = arith.constant 0 : index
    %45 = vector.load %arg7[%c16_26, %c0_27] : memref<32x128xf32, #tpu.memory_space<vmem>>, vector<16x128xf32>
    %cst_28 = arith.constant dense<0.000000e+00> : vector<8x128xf32>
    %46 = tpu.matmul %44, %45, %cst_28 {dimension_numbers = #tpu.dot_dimension_numbers<[1], [0], [0], [1], [0, 0, 1, 1], [], []>} : vector<8x16xf32>, vector<16x128xf32>, vector<8x128xf32> -> vector<8x128xf32>
    %47 = arith.addf %29, %46 : vector<8x128xf32>
    %c0_29 = arith.constant 0 : index
    %c0_30 = arith.constant 0 : index
    %c0_31 = arith.constant 0 : index
    %48 = vector.load %arg9[%c0_29, %c0_30, %c0_31] : memref<1x8x128xf32, #tpu.memory_space<vmem>>, vector<1x8x128xf32>
    %49 = vector.shape_cast %48 : vector<1x8x128xf32> to vector<8x128xf32>
    %50 = vector.shape_cast %47 : vector<8x128xf32> to vector<1x8x128xf32>
    tpu.vector_store %arg9[%c0_29, %c0_30, %c0_31], %50 {strides = array<i32>} : memref<1x8x128xf32, #tpu.memory_space<vmem>>, vector<1x8x128xf32>,
    return
  }
  func.func @transform_0(%arg0: i32, %arg1: i32) -> (i32, i32, i32) {
    %c0_i32 = arith.constant 0 : i32
    %c0_i32_0 = arith.constant 0 : i32
    return %arg0, %arg1, %c0_i32 : i32, i32, i32
  }
  func.func @transform_1(%arg0: i32, %arg1: i32) -> (i32, i32, i32) {
    %c0_i32 = arith.constant 0 : i32
    %c0_i32_0 = arith.constant 0 : i32
    %c0_i32_1 = arith.constant 0 : i32
    return %arg0, %c0_i32, %c0_i32_0 : i32, i32, i32
  }
  func.func @transform_2(%arg0: i32, %arg1: i32) -> (i32, i32) {
    %c0_i32 = arith.constant 0 : i32
    %c0_i32_0 = arith.constant 0 : i32
    %c0_i32_1 = arith.constant 0 : i32
    return %c0_i32, %c0_i32_0 : i32, i32
  }
  func.func @transform_3(%arg0: i32, %arg1: i32) -> (i32, i32) {
    %c0_i32 = arith.constant 0 : i32
    %c0_i32_0 = arith.constant 0 : i32
    %c0_i32_1 = arith.constant 0 : i32
    return %c0_i32, %c0_i32_0 : i32, i32
  }
  func.func @transform_4(%arg0: i32, %arg1: i32) -> (i32, i32) {
    %c0_i32 = arith.constant 0 : i32
    %c0_i32_0 = arith.constant 0 : i32
    %c0_i32_1 = arith.constant 0 : i32
    return %c0_i32, %c0_i32_0 : i32, i32
  }
  func.func @transform_5(%arg0: i32, %arg1: i32) -> (i32, i32) {
    %c0_i32 = arith.constant 0 : i32
    %c0_i32_0 = arith.constant 0 : i32
    %c0_i32_1 = arith.constant 0 : i32
    return %c0_i32, %c0_i32_0 : i32, i32
  }
  func.func @transform_6(%arg0: i32, %arg1: i32) -> (i32, i32) {
    %c0_i32 = arith.constant 0 : i32
    %c0_i32_0 = arith.constant 0 : i32
    %c0_i32_1 = arith.constant 0 : i32
    return %c0_i32, %c0_i32_0 : i32, i32
  }
  func.func @transform_7(%arg0: i32, %arg1: i32) -> (i32, i32, i32) {
    %c0_i32 = arith.constant 0 : i32
    %c0_i32_0 = arith.constant 0 : i32
    return %arg0, %arg1, %c0_i32 : i32, i32, i32
  }
}

</mosaic_0001>

<llo_original>
// kernel: tpu_custom_call.1
$region0: #{tpu_custom_call.1}
  #allocation0 [shape = 'u32[]', space=smem, size = 0x4, offset = 0x4, fixed_abs, tag = 'smem constant byte address 0x4 - core index']
  #allocation1 [shape = 'u32[72,128]{1,0:T(1,128)}', space=vmem, size = 0x9000, scoped, tag = 'internal scratch']
  #allocation2 [shape = 'f32[8,32]{1,0:T(8,128)}', space=vmem, size = 0x1000, scoped, tag = 'scratch operand']
  #allocation3 [shape = 'f32[8,32]{1,0:T(8,128)}', space=vmem, size = 0x1000, scoped, tag = 'scratch operand']
  %s0 = inlined_call_operand.hbm [shape: f32[2,8,32], index: 0, kind: input, shape index: {}]
  %s1 = inlined_call_operand.hbm [shape: f32[2,8,32], index: 1, kind: input, shape index: {}]
  %s2 = inlined_call_operand.hbm [shape: f32[32,32], index: 2, kind: input, shape index: {}]
  %s3 = inlined_call_operand.hbm [shape: f32[32,32], index: 3, kind: input, shape index: {}]
  %s4 = inlined_call_operand.hbm [shape: f32[32,32], index: 4, kind: input, shape index: {}]
  %s5 = inlined_call_operand.hbm [shape: f32[32,128], index: 5, kind: input, shape index: {}]
  %s6 = inlined_call_operand.vmem [shape: f32[1,128], index: 6, kind: input, shape index: {}]
  %s7 = inlined_call_operand.hbm [shape: f32[2,8,128], index: 7, kind: output, shape index: {}]
  %s8 = sld [smem:[#allocation0]]
  $region89: #{tpu_custom_call.1} parent=0
    _
  %s10 = ssub.s32 1, %s8
  %s11 = scalar_select 0, %s10, %s8
  $region1: #{tpu_custom_call.1} parent=0
    #allocation4 [shape = 'u8[8192]{0}', space=vmem, size = 0x2000, scoped, tag = 'input window, operand 0']
    #allocation5 [shape = 's32[2]{0}', space=sflag, size = 0x8, scoped, tag = 'scoped memory for tpu_custom_call.1']
    #allocation6 [shape = 's32[2]{0}', space=sflag, size = 0x8, scoped, tag = 'scoped memory for tpu_custom_call.1']
    #allocation7 [shape = 'u8[8192]{0}', space=vmem, size = 0x2000, scoped, tag = 'input window, operand 1']
    #allocation8 [shape = 's32[2]{0}', space=sflag, size = 0x8, scoped, tag = 'scoped memory for tpu_custom_call.1']
    #allocation9 [shape = 'u8[16384]{0}', space=vmem, size = 0x4000, scoped, tag = 'input window, operand 2, single buffered']
    #allocation10 [shape = 'u8[16384]{0}', space=vmem, size = 0x4000, scoped, tag = 'input window, operand 3, single buffered']
    #allocation11 [shape = 's32[1]{0}', space=sflag, size = 0x4, scoped, tag = 'scoped memory for tpu_custom_call.1']
    #allocation12 [shape = 'u8[16384]{0}', space=vmem, size = 0x4000, scoped, tag = 'input window, operand 4, single buffered']
    #allocation13 [shape = 'u8[16384]{0}', space=vmem, size = 0x4000, scoped, tag = 'input window, operand 5, single buffered']
    #allocation14 [shape = 's32[1]{0}', space=sflag, size = 0x4, scoped, tag = 'scoped memory for tpu_custom_call.1']
    #allocation15 [shape = 'u8[8192]{0}', space=vmem, size = 0x2000, scoped, tag = 'output window, operand 0']
    %12 = vsyncpa [#allocation5], 0
    %s13 = scalar_lea.sflag [#allocation5], 1
    %14 = vsyncpa %s13, 0
    %15 = vsyncpa [#allocation8], 0
    %s16 = scalar_lea.sflag [#allocation8], 1
    %17 = vsyncpa %s16, 0
    %18 = vsyncpa [#allocation11], 0
    %19 = vsyncpa [#allocation14], 0
    %20 = vsyncpa [#allocation6], 0
    %s21 = scalar_lea.sflag [#allocation6], 1
    %22 = vsyncpa %s21, 0
    loop: start=0, step=1, limit=4
    $region2: #{tpu_custom_call.1} parent=1 // loop_pre_header
      _
    $region3: #{tpu_custom_call.1} parent=1 // loop_header
      %s24 = sphi 0, %s28
      %p25 = scmp.ge.s32.totalorder %s24, 4
      %s31 = sphi 0, %s43
      %s32 = sphi 0, %s39
      %s33 = sphi 0, %s31
      %s34 = sphi 0, %s32
      %s35 = sphi 0, %s33
      %s36 = sphi 0, %s34
      %s48 = sphi 0, %s50
      %s51 = sphi 0, %s48
      %s52 = sphi 0, %s51
      %s68 = sphi 0, %s52
      %s74 = sphi 0, %s76
      %s77 = sphi 0, %s74
      %s78 = sphi 0, %s77
      %s94 = sphi 0, %s78
      %s98 = sphi 0, %s98
      %s100 = sphi 0, %s98
      %s101 = sphi 0, %s100
      %s115 = sphi 0, %s101
      %s119 = sphi 0, %s119
      %s121 = sphi 0, %s119
      %s122 = sphi 0, %s121
      %s136 = sphi 0, %s122
      %s140 = sphi 0, %s140
      %s142 = sphi 0, %s140
      %s143 = sphi 0, %s142
      %s157 = sphi 0, %s143
      %s161 = sphi 0, %s161
      %s163 = sphi 0, %s161
      %s164 = sphi 0, %s163
      %s178 = sphi 0, %s164
      %s182 = sphi 0, %s182
      %s184 = sphi 0, %s182
      %s185 = sphi 0, %s184
      %s199 = sphi 0, %s185
      %s207 = sphi 0, %s209
      %s210 = sphi 0, %s207
      %s211 = sphi 0, %s210
      %s227 = sphi 0, %s211
    $region4: #{tpu_custom_call.1} parent=1 // loop_header_branch
      %27 = sbr.rel (%p25) target = $region8
    $region5: #{tpu_custom_call.1} parent=1 // loop_body
      %s29 = ssub.s32 %s24, 1
      %s30 = ssub.s32 %s24, 2
      %s37 = sadd.s32 1, %s32
      %p38 = scmp.ge.s32.totalorder %s37, 1
      %s39 = scalar_select %p38, 0, %s37
      %s40 = sadd.s32 1, %s31
      %s41 = scalar_select %p38, %s40, %s31
      %p42 = scmp.ge.s32.totalorder %s41, 2
      %s43 = scalar_select %p42, 0, %s41
      %s44 = ssub.s32 %s31, %s43
      %s45 = ssub.s32 %s32, %s39
      %s46 = sor.u32 %s44, %s45
      %p47 = scmp.eq.s32.totalorder %s46, 0
      %s49 = sadd.s32 %s48, 1
      %s50 = scalar_select %p47, %s48, %s49
      %p53 = pneg %p47
      %p54 = scmp.eq.s32.totalorder %s24, 1
      %p55 = por %p53, %p54
      %p56 = scmp.ne.s32.totalorder %s48, %s51
      %p57 = scmp.eq.s32.totalorder %s24, 0
      %p58 = por %p56, %p57
      %p59 = scmp.ne.s32.totalorder %s48, %s51
      %p60 = scmp.eq.s32.totalorder %s29, 1
      %p61 = por %p59, %p60
      %p62 = scmp.ne.s32.totalorder %s51, %s52
      %p63 = scmp.eq.s32.totalorder %s29, 0
      %p64 = por %p62, %p63
      %p65 = scmp.ne.s32.totalorder %s51, %s52
      %p66 = scmp.eq.s32.totalorder %s30, 1
      %p67 = por %p65, %p66
      %p69 = scmp.ne.s32.totalorder %s52, %s68
      %p70 = scmp.eq.s32.totalorder %s30, 0
      %p71 = por %p69, %p70
      %s72 = ssub.s32 %s31, %s43
      %p73 = scmp.eq.s32.totalorder %s72, 0
      %s75 = sadd.s32 %s74, 1
      %s76 = scalar_select %p73, %s74, %s75
      %p79 = pneg %p73
      %p80 = scmp.eq.s32.totalorder %s24, 1
      %p81 = por %p79, %p80
      %p82 = scmp.ne.s32.totalorder %s74, %s77
      %p83 = scmp.eq.s32.totalorder %s24, 0
      %p84 = por %p82, %p83
      %p85 = scmp.ne.s32.totalorder %s74, %s77
      %p86 = scmp.eq.s32.totalorder %s29, 1
      %p87 = por %p85, %p86
      %p88 = scmp.ne.s32.totalorder %s77, %s78
      %p89 = scmp.eq.s32.totalorder %s29, 0
      %p90 = por %p88, %p89
      %p91 = scmp.ne.s32.totalorder %s77, %s78
      %p92 = scmp.eq.s32.totalorder %s30, 1
      %p93 = por %p91, %p92
      %p95 = scmp.ne.s32.totalorder %s78, %s94
      %p96 = scmp.eq.s32.totalorder %s30, 0
      %p97 = por %p95, %p96
      %s99 = sadd.s32 %s98, 1
      %p102 = scmp.eq.s32.totalorder %s24, 1
      %p103 = scmp.ne.s32.totalorder %s98, %s100
      %p104 = scmp.eq.s32.totalorder %s24, 0
      %p105 = por %p103, %p104
      %p106 = scmp.ne.s32.totalorder %s98, %s100
      %p107 = scmp.eq.s32.totalorder %s29, 1
      %p108 = por %p106, %p107
      %p109 = scmp.ne.s32.totalorder %s100, %s101
      %p110 = scmp.eq.s32.totalorder %s29, 0
      %p111 = por %p109, %p110
      %p112 = scmp.ne.s32.totalorder %s100, %s101
      %p113 = scmp.eq.s32.totalorder %s30, 1
      %p114 = por %p112, %p113
      %p116 = scmp.ne.s32.totalorder %s101, %s115
      %p117 = scmp.eq.s32.totalorder %s30, 0
      %p118 = por %p116, %p117
      %s120 = sadd.s32 %s119, 1
      %p123 = scmp.eq.s32.totalorder %s24, 1
      %p124 = scmp.ne.s32.totalorder %s119, %s121
      %p125 = scmp.eq.s32.totalorder %s24, 0
      %p126 = por %p124, %p125
      %p127 = scmp.ne.s32.totalorder %s119, %s121
      %p128 = scmp.eq.s32.totalorder %s29, 1
      %p129 = por %p127, %p128
      %p130 = scmp.ne.s32.totalorder %s121, %s122
      %p131 = scmp.eq.s32.totalorder %s29, 0
      %p132 = por %p130, %p131
      %p133 = scmp.ne.s32.totalorder %s121, %s122
      %p134 = scmp.eq.s32.totalorder %s30, 1
      %p135 = por %p133, %p134
      %p137 = scmp.ne.s32.totalorder %s122, %s136
      %p138 = scmp.eq.s32.totalorder %s30, 0
      %p139 = por %p137, %p138
      %s141 = sadd.s32 %s140, 1
      %p144 = scmp.eq.s32.totalorder %s24, 1
      %p145 = scmp.ne.s32.totalorder %s140, %s142
      %p146 = scmp.eq.s32.totalorder %s24, 0
      %p147 = por %p145, %p146
      %p148 = scmp.ne.s32.totalorder %s140, %s142
      %p149 = scmp.eq.s32.totalorder %s29, 1
      %p150 = por %p148, %p149
      %p151 = scmp.ne.s32.totalorder %s142, %s143
      %p152 = scmp.eq.s32.totalorder %s29, 0
      %p153 = por %p151, %p152
      %p154 = scmp.ne.s32.totalorder %s142, %s143
      %p155 = scmp.eq.s32.totalorder %s30, 1
      %p156 = por %p154, %p155
      %p158 = scmp.ne.s32.totalorder %s143, %s157
      %p159 = scmp.eq.s32.totalorder %s30, 0
      %p160 = por %p158, %p159
      %s162 = sadd.s32 %s161, 1
      %p165 = scmp.eq.s32.totalorder %s24, 1
      %p166 = scmp.ne.s32.totalorder %s161, %s163
      %p167 = scmp.eq.s32.totalorder %s24, 0
      %p168 = por %p166, %p167
      %p169 = scmp.ne.s32.totalorder %s161, %s163
      %p170 = scmp.eq.s32.totalorder %s29, 1
      %p171 = por %p169, %p170
      %p172 = scmp.ne.s32.totalorder %s163, %s164
      %p173 = scmp.eq.s32.totalorder %s29, 0
      %p174 = por %p172, %p173
      %p175 = scmp.ne.s32.totalorder %s163, %s164
      %p176 = scmp.eq.s32.totalorder %s30, 1
      %p177 = por %p175, %p176
      %p179 = scmp.ne.s32.totalorder %s164, %s178
      %p180 = scmp.eq.s32.totalorder %s30, 0
      %p181 = por %p179, %p180
      %s183 = sadd.s32 %s182, 1
      %p186 = scmp.eq.s32.totalorder %s24, 1
      %p187 = scmp.ne.s32.totalorder %s182, %s184
      %p188 = scmp.eq.s32.totalorder %s24, 0
      %p189 = por %p187, %p188
      %p190 = scmp.ne.s32.totalorder %s182, %s184
      %p191 = scmp.eq.s32.totalorder %s29, 1
      %p192 = por %p190, %p191
      %p193 = scmp.ne.s32.totalorder %s184, %s185
      %p194 = scmp.eq.s32.totalorder %s29, 0
      %p195 = por %p193, %p194
      %p196 = scmp.ne.s32.totalorder %s184, %s185
      %p197 = scmp.eq.s32.totalorder %s30, 1
      %p198 = por %p196, %p197
      %p200 = scmp.ne.s32.totalorder %s185, %s199
      %p201 = scmp.eq.s32.totalorder %s30, 0
      %p202 = por %p200, %p201
      %s203 = ssub.s32 %s31, %s43
      %s204 = ssub.s32 %s32, %s39
      %s205 = sor.u32 %s203, %s204
      %p206 = scmp.eq.s32.totalorder %s205, 0
      %s208 = sadd.s32 %s207, 1
      %s209 = scalar_select %p206, %s207, %s208
      %p212 = pneg %p206
      %p213 = scmp.eq.s32.totalorder %s24, 1
      %p214 = por %p212, %p213
      %p215 = scmp.ne.s32.totalorder %s207, %s210
      %p216 = scmp.eq.s32.totalorder %s24, 0
      %p217 = por %p215, %p216
      %p218 = scmp.ne.s32.totalorder %s207, %s210
      %p219 = scmp.eq.s32.totalorder %s29, 1
      %p220 = por %p218, %p219
      %p221 = scmp.ne.s32.totalorder %s210, %s211
      %p222 = scmp.eq.s32.totalorder %s29, 0
      %p223 = por %p221, %p222
      %p224 = scmp.ne.s32.totalorder %s210, %s211
      %p225 = scmp.eq.s32.totalorder %s30, 1
      %p226 = por %p224, %p225
      %p228 = scmp.ne.s32.totalorder %s211, %s227
      %p229 = scmp.eq.s32.totalorder %s30, 0
      %p230 = por %p228, %p229
      %p231 = scmp.le.s32.totalorder 1, %s24
      %p232 = scmp.lt.s32.totalorder %s24, 3
      %p233 = pnand %p231, %p232
      %p234 = pneg %p233
      // Predicated region
      $region9: #{tpu_custom_call.1} parent=5 // pred_check
        _
      $region10: #{tpu_custom_call.1} parent=5 // pred_check_branch
        %236 = sbr.rel (%p233) target = $region12
      $region11: #{tpu_custom_call.1} parent=5 // pred_region
        %s237 = ssub.s32 %s24, 1
        // Predicated region
        $region13: #{tpu_custom_call.1} parent=11 // pred_check
          %p238 = pneg %p111
        $region14: #{tpu_custom_call.1} parent=11 // pred_check_branch
          %240 = sbr.rel (%p238) target = $region16
        $region15: #{tpu_custom_call.1} parent=11 // pred_region
          %242 = vsyncadd [#allocation8], 0
          %s243 = sshll.u32 %s2, 4
          %s244 = int_to_ptr.hbm [resolvable:$true] %s243
          %s245 = sshll.u32 [#allocation9], 4
          %s246 = int_to_ptr.vmem [resolvable:$true] %s245
          %251 = dma.hbm_to_vmem [thread:$0]  %s244, 512, %s246, [#allocation8], 128, 128, 8
        $region16: #{tpu_custom_call.1} parent=11 // pred_fallthru
          _
        // Predicated region
        $region17: #{tpu_custom_call.1} parent=11 // pred_check
          %p252 = pneg %p132
        $region18: #{tpu_custom_call.1} parent=11 // pred_check_branch
          %254 = sbr.rel (%p252) target = $region20
        $region19: #{tpu_custom_call.1} parent=11 // pred_region
          %256 = vsyncadd [#allocation11], 0
          %s257 = sshll.u32 %s3, 4
          %s258 = int_to_ptr.hbm [resolvable:$true] %s257
          %s259 = sshll.u32 [#allocation10], 4
          %s260 = int_to_ptr.vmem [resolvable:$true] %s259
          %265 = dma.hbm_to_vmem [thread:$0]  %s258, 512, %s260, [#allocation11], 128, 128, 8
        $region20: #{tpu_custom_call.1} parent=11 // pred_fallthru
          _
        // Predicated region
        $region21: #{tpu_custom_call.1} parent=11 // pred_check
          %p266 = pneg %p153
        $region22: #{tpu_custom_call.1} parent=11 // pred_check_branch
          %268 = sbr.rel (%p266) target = $region24
        $region23: #{tpu_custom_call.1} parent=11 // pred_region
          %270 = vsyncadd [#allocation11], 0
          %s271 = sshll.u32 %s4, 4
          %s272 = int_to_ptr.hbm [resolvable:$true] %s271
          %s273 = sshll.u32 [#allocation12], 4
          %s274 = int_to_ptr.vmem [resolvable:$true] %s273
          %279 = dma.hbm_to_vmem [thread:$0]  %s272, 512, %s274, [#allocation11], 128, 128, 8
        $region24: #{tpu_custom_call.1} parent=11 // pred_fallthru
          _
        // Predicated region
        $region25: #{tpu_custom_call.1} parent=11 // pred_check
          %p280 = pneg %p174
        $region26: #{tpu_custom_call.1} parent=11 // pred_check_branch
          %282 = sbr.rel (%p280) target = $region28
        $region27: #{tpu_custom_call.1} parent=11 // pred_region
          %284 = vsyncadd [#allocation14], 0
          %s285 = sshll.u32 %s5, 4
          %s286 = int_to_ptr.hbm [resolvable:$true] %s285
          %s287 = sshll.u32 [#allocation13], 4
          %s288 = int_to_ptr.vmem [resolvable:$true] %s287
          %293 = dma.hbm_to_vmem [thread:$0]  %s286, 512, %s288, [#allocation14], 128, 128, 8
        $region28: #{tpu_custom_call.1} parent=11 // pred_fallthru
          _
        // Predicated region
        $region29: #{tpu_custom_call.1} parent=11 // pred_check
          %p294 = pneg %p195
        $region30: #{tpu_custom_call.1} parent=11 // pred_check_branch
          %296 = sbr.rel (%p294) target = $region32
        $region31: #{tpu_custom_call.1} parent=11 // pred_region
          _
        $region32: #{tpu_custom_call.1} parent=11 // pred_fallthru
          _
      $region12: #{tpu_custom_call.1} parent=5 // pred_fallthru
        _
      %p297 = scmp.lt.s32.totalorder %s24, 2
      // Predicated region
      $region33: #{tpu_custom_call.1} parent=5 // pred_check
        %p298 = pneg %p297
      $region34: #{tpu_custom_call.1} parent=5 // pred_check_branch
        %300 = sbr.rel (%p298) target = $region36
      $region35: #{tpu_custom_call.1} parent=5 // pred_region
        // Predicated region
        $region37: #{tpu_custom_call.1} parent=35 // pred_check
          %p301 = pneg %p58
        $region38: #{tpu_custom_call.1} parent=35 // pred_check_branch
          %303 = sbr.rel (%p301) target = $region40
        $region39: #{tpu_custom_call.1} parent=35 // pred_region
          %s304 = sand.u32 %s48, 1
          %s305 = scalar_lea.sflag [#allocation5], %s304
          %s306 = sand.u32 %s48, 1
          %s307 = smul.addr %s306, 8
          %s308 = scalar_lea.vmem [#allocation4], %s307
          %310 = vsyncadd %s305, 0
          %s311 = sadd.s32 %s32, %s31
          %s312 = smul.addr %s311, 8
          %s313 = scalar_lea.hbm %s0, %s312
          %s315 = sshll.u32 %s313, 4
          %s316 = int_to_ptr.hbm [resolvable:$true] %s315
          %s317 = sshll.u32 %s308, 4
          %s318 = int_to_ptr.vmem [resolvable:$true] %s317
          %320 = dma.hbm_to_vmem [thread:$0]  %s316, 128, %s318, %s305
        $region40: #{tpu_custom_call.1} parent=35 // pred_fallthru
          _
        // Predicated region
        $region41: #{tpu_custom_call.1} parent=35 // pred_check
          %p321 = pneg %p84
        $region42: #{tpu_custom_call.1} parent=35 // pred_check_branch
          %323 = sbr.rel (%p321) target = $region44
        $region43: #{tpu_custom_call.1} parent=35 // pred_region
          %s324 = sand.u32 %s24, 1
          %s325 = scalar_lea.sflag [#allocation8], %s324
          %s326 = sand.u32 %s74, 1
          %s327 = smul.addr %s326, 8
          %s328 = scalar_lea.vmem [#allocation7], %s327
          %330 = vsyncadd %s325, 0
          %s331 = smul.addr %s31, 8
          %s332 = scalar_lea.hbm %s1, %s331
          %s334 = sshll.u32 %s332, 4
          %s335 = int_to_ptr.hbm [resolvable:$true] %s334
          %s336 = sshll.u32 %s328, 4
          %s337 = int_to_ptr.vmem [resolvable:$true] %s336
          %339 = dma.hbm_to_vmem [thread:$0]  %s335, 128, %s337, %s325
        $region44: #{tpu_custom_call.1} parent=35 // pred_fallthru
          _
      $region36: #{tpu_custom_call.1} parent=5 // pred_fallthru
        _
      %p340 = scmp.le.s32.totalorder 1, %s24
      %p341 = scmp.lt.s32.totalorder %s24, 3
      %p342 = pnand %p340, %p341
      %p343 = pneg %p342
      // Predicated region
      $region45: #{tpu_custom_call.1} parent=5 // pred_check
        _
      $region46: #{tpu_custom_call.1} parent=5 // pred_check_branch
        %345 = sbr.rel (%p342) target = $region48
      $region47: #{tpu_custom_call.1} parent=5 // pred_region
        %s346 = ssub.s32 %s24, 1
        %s347 = sand.u32 %s51, 1
        %s348 = scalar_lea.sflag [#allocation5], %s347
        %s349 = sand.u32 %s51, 1
        %s350 = smul.addr %s349, 8
        %s351 = scalar_lea.vmem [#allocation4], %s350
        // Predicated region
        $region49: #{tpu_custom_call.1} parent=47 // pred_check
          %p352 = pneg %p64
        $region50: #{tpu_custom_call.1} parent=47 // pred_check_branch
          %354 = sbr.rel (%p352) target = $region52
        $region51: #{tpu_custom_call.1} parent=47 // pred_region
          %356 = dma.done %s348, 128
        $region52: #{tpu_custom_call.1} parent=47 // pred_fallthru
          _
        %s357 = sand.u32 %s29, 1
        %s358 = scalar_lea.sflag [#allocation8], %s357
        %s359 = sand.u32 %s77, 1
        %s360 = smul.addr %s359, 8
        %s361 = scalar_lea.vmem [#allocation7], %s360
        // Predicated region
        $region53: #{tpu_custom_call.1} parent=47 // pred_check
          %p362 = pneg %p90
        $region54: #{tpu_custom_call.1} parent=47 // pred_check_branch
          %364 = sbr.rel (%p362) target = $region56
        $region55: #{tpu_custom_call.1} parent=47 // pred_region
          %366 = dma.done %s358, 128
        $region56: #{tpu_custom_call.1} parent=47 // pred_fallthru
          _
        // Predicated region
        $region57: #{tpu_custom_call.1} parent=47 // pred_check
          %p367 = pneg %p111
        $region58: #{tpu_custom_call.1} parent=47 // pred_check_branch
          %369 = sbr.rel (%p367) target = $region60
        $region59: #{tpu_custom_call.1} parent=47 // pred_region
          %371 = dma.done [#allocation8], 512
        $region60: #{tpu_custom_call.1} parent=47 // pred_fallthru
          _
        // Predicated region
        $region61: #{tpu_custom_call.1} parent=47 // pred_check
          %p372 = pneg %p132
        $region62: #{tpu_custom_call.1} parent=47 // pred_check_branch
          %374 = sbr.rel (%p372) target = $region64
        $region63: #{tpu_custom_call.1} parent=47 // pred_region
          %376 = dma.done [#allocation11], 512
        $region64: #{tpu_custom_call.1} parent=47 // pred_fallthru
          _
        // Predicated region
        $region65: #{tpu_custom_call.1} parent=47 // pred_check
          %p377 = pneg %p153
        $region66: #{tpu_custom_call.1} parent=47 // pred_check_branch
          %379 = sbr.rel (%p377) target = $region68
        $region67: #{tpu_custom_call.1} parent=47 // pred_region
          %381 = dma.done [#allocation11], 512
        $region68: #{tpu_custom_call.1} parent=47 // pred_fallthru
          _
        // Predicated region
        $region69: #{tpu_custom_call.1} parent=47 // pred_check
          %p382 = pneg %p174
        $region70: #{tpu_custom_call.1} parent=47 // pred_check_branch
          %384 = sbr.rel (%p382) target = $region72
        $region71: #{tpu_custom_call.1} parent=47 // pred_region
          %386 = dma.done [#allocation14], 512
        $region72: #{tpu_custom_call.1} parent=47 // pred_fallthru
          _
        %s387 = sand.u32 %s51, 1
        %s388 = scalar_lea.sflag [#allocation5], %s387
        %s389 = sand.u32 %s51, 1
        %s390 = smul.addr %s389, 8
        %s391 = scalar_lea.vmem [#allocation4], %s390
        %p392 = pneg %p64
        %p393 = pneg %p61
        %s394 = sand.u32 %s29, 1
        %s395 = scalar_lea.sflag [#allocation8], %s394
        %s396 = sand.u32 %s77, 1
        %s397 = smul.addr %s396, 8
        %s398 = scalar_lea.vmem [#allocation7], %s397
        %p399 = pneg %p90
        %p400 = pneg %p87
        %p401 = pneg %p111
        %p402 = pneg %p108
        %p403 = pneg %p132
        %p404 = pneg %p129
        %p405 = pneg %p153
        %p406 = pneg %p150
        %p407 = pneg %p174
        %p408 = pneg %p171
        %p409 = pneg %p195
        %p410 = pneg %p192
        %p411 = pneg %p223
        %p412 = pneg %p220
        %s413 = sand.u32 %s210, 1
        %s414 = scalar_lea.sflag [#allocation6], %s413
        %s415 = sand.u32 %s210, 1
        %s416 = smul.addr %s415, 8
        %s417 = scalar_lea.vmem [#allocation15], %s416
        %p418 = scmp.eq.s32.totalorder %s34, 0
        // Predicated region
        $region73: #{tpu_custom_call.1} parent=47 // pred_check
          %p419 = pneg %p418
        $region74: #{tpu_custom_call.1} parent=47 // pred_check_branch
          %421 = sbr.rel (%p419) target = $region76
        $region75: #{tpu_custom_call.1} parent=47 // pred_region
          %v422 = vld [vmem:[%s361] sm:$0xff]
          %v423 = vld [vmem:[#allocation10] sm:$0xff]
          %v424 = vld [vmem:[#allocation10 + $0x8] sm:$0xff]
          %v425 = vld [vmem:[#allocation10 + $0x10] sm:$0xff]
          %v426 = vld [vmem:[#allocation10 + $0x18] sm:$0xff]
          %vm427 = vcmask 261120
          %v429 = vsel %vm427, %v422, 0
          %431 = vmatpush.msra.mxu0 0.0
          %432 = vmatpush.msra.mxu0 0.0
          %433 = vmatpush.msra.mxu0 0.0
          %434 = vmatpush.msra.mxu0 0.0
          %435 = vmatpush.msra.mxu0 0.0
          %436 = vmatpush.msra.mxu0 0.0
          %437 = vmatpush.msra.mxu0 0.0
          %438 = vmatpush.msra.mxu0 0.0
          %439 = vmatpush.msra.mxu0 0.0
          %440 = vmatpush.msra.mxu0 0.0
          %441 = vmatpush.msra.mxu0 0.0
          %442 = vmatpush.msra.mxu0 0.0
          %443 = vmatpush.msra.mxu0 %v426
          %444 = vmatpush.msra.mxu0 %v425
          %445 = vmatpush.msra.mxu0 %v424
          %446 = vmatpush.msra.mxu0 %v423
          %447 = vmatmul.f32.gmra.mxu0 %v429
          %v448 = vpop.f32.mrf.mxu0
          %v449 = vadd.f32 0.0, %v448
          %450 = vdwg.mxu0
          %451 = vst.msk [vmem:[#allocation2] sm:$0xff] %vm427, %v449
          %v452 = vld [vmem:[#allocation12] sm:$0xff]
          %v453 = vld [vmem:[#allocation12 + $0x8] sm:$0xff]
          %v454 = vld [vmem:[#allocation12 + $0x10] sm:$0xff]
          %v455 = vld [vmem:[#allocation12 + $0x18] sm:$0xff]
          %456 = vmatpush.msra.mxu0 0.0
          %457 = vmatpush.msra.mxu0 0.0
          %458 = vmatpush.msra.mxu0 0.0
          %459 = vmatpush.msra.mxu0 0.0
          %460 = vmatpush.msra.mxu0 0.0
          %461 = vmatpush.msra.mxu0 0.0
          %462 = vmatpush.msra.mxu0 0.0
          %463 = vmatpush.msra.mxu0 0.0
          %464 = vmatpush.msra.mxu0 0.0
          %465 = vmatpush.msra.mxu0 0.0
          %466 = vmatpush.msra.mxu0 0.0
          %467 = vmatpush.msra.mxu0 0.0
          %468 = vmatpush.msra.mxu0 %v455
          %469 = vmatpush.msra.mxu0 %v454
          %470 = vmatpush.msra.mxu0 %v453
          %471 = vmatpush.msra.mxu0 %v452
          %472 = vmatmul.f32.gmra.mxu0 %v429
          %v473 = vpop.f32.mrf.mxu0
          %v474 = vadd.f32 0.0, %v473
          %475 = vdwg.mxu0
          %476 = vst.msk [vmem:[#allocation3] sm:$0xff] %vm427, %v474
        $region76: #{tpu_custom_call.1} parent=47 // pred_fallthru
          _
        %v477 = vld [vmem:[%s351] sm:$0xff]
        %v478 = vld [vmem:[#allocation9] sm:$0xff]
        %v479 = vld [vmem:[#allocation9 + $0x8] sm:$0xff]
        %v480 = vld [vmem:[#allocation9 + $0x10] sm:$0xff]
        %v481 = vld [vmem:[#allocation9 + $0x18] sm:$0xff]
        %vm482 = vcmask 261120
        %v484 = vsel %vm482, %v477, 0
        %486 = vmatpush.msra.mxu0 0.0
        %487 = vmatpush.msra.mxu0 0.0
        %488 = vmatpush.msra.mxu0 0.0
        %489 = vmatpush.msra.mxu0 0.0
        %490 = vmatpush.msra.mxu0 0.0
        %491 = vmatpush.msra.mxu0 0.0
        %492 = vmatpush.msra.mxu0 0.0
        %493 = vmatpush.msra.mxu0 0.0
        %494 = vmatpush.msra.mxu0 0.0
        %495 = vmatpush.msra.mxu0 0.0
        %496 = vmatpush.msra.mxu0 0.0
        %497 = vmatpush.msra.mxu0 0.0
        %498 = vmatpush.msra.mxu0 %v481
        %499 = vmatpush.msra.mxu0 %v480
        %500 = vmatpush.msra.mxu0 %v479
        %501 = vmatpush.msra.mxu0 %v478
        %502 = vmatmul.f32.gmra.mxu0 %v484
        %v503 = vpop.f32.mrf.mxu0
        %v504 = vadd.f32 0.0, %v503
        %505 = vdwg.mxu0
        %v506 = vmul.f32 %v504, 0.25
        %v507 = vld [vmem:[%s6] sm:$0x1]
        %v509 = vperm.slane %v507, 0
        %v511 = vld [vmem:[#allocation2] sm:$0xff]
        %v512 = vld [vmem:[#allocation3] sm:$0xff]
        %vm513 = vcmask 130048
        %v515 = vsel %vm513, %v506, 0
        %v518 = vsel %vm513, %v511, 0
        %520 = vmatpush.xpose.msra.mxu0 0.0
        %521 = vmatpush.xpose.msra.mxu0 0.0
        %522 = vmatpush.xpose.msra.mxu0 0.0
        %523 = vmatpush.xpose.msra.mxu0 0.0
        %524 = vmatpush.xpose.msra.mxu0 0.0
        %525 = vmatpush.xpose.msra.mxu0 0.0
        %526 = vmatpush.xpose.msra.mxu0 0.0
        %527 = vmatpush.xpose.msra.mxu0 0.0
        %528 = vmatpush.xpose.msra.mxu0 0.0
        %529 = vmatpush.xpose.msra.mxu0 0.0
        %530 = vmatpush.xpose.msra.mxu0 0.0
        %531 = vmatpush.xpose.msra.mxu0 0.0
        %532 = vmatpush.xpose.msra.mxu0 0.0
        %533 = vmatpush.xpose.msra.mxu0 0.0
        %534 = vmatpush.xpose.msra.mxu0 0.0
        %535 = vmatpush.xpose.msra.mxu0 %v518
        %536 = vmatmul.f32.gmra.mxu0 %v515
        %v537 = vpop.f32.mrf.mxu0
        %v538 = vadd.f32 0.0, %v537
        %539 = vdwg.mxu0
        %vm540 = vcmask 64512
        %v541 = vsel %vm540, %v538, -inf
        %542 = vmax.xlane.f32.xlu0 %v541
        %v543 = vpop.xlane.xlu0 %542
        %v544 = vsub.f32 %v538, %v543
        %v545 = vmul.f32 %v544, 1.442695
        %v546 = vpow.pop %v545
        %v547 = vsel %vm540, %v546, 0.0
        %548 = vadd.xlane.f32.xlu0 %v547
        %v549 = vpop.xlane.xlu0 %548
        %v550 = vrcp.pop %v549
        %v551 = vmul.f32 %v546, %v550
        %v553 = vsel %vm540, %v551, 0
        %555 = vmatpush.msra.mxu0 0.0
        %556 = vmatpush.msra.mxu0 0.0
        %557 = vmatpush.msra.mxu0 0.0
        %558 = vmatpush.msra.mxu0 0.0
        %559 = vmatpush.msra.mxu0 0.0
        %560 = vmatpush.msra.mxu0 0.0
        %561 = vmatpush.msra.mxu0 0.0
        %562 = vmatpush.msra.mxu0 0.0
        %563 = vmatpush.msra.mxu0 0.0
        %564 = vmatpush.msra.mxu0 0.0
        %565 = vmatpush.msra.mxu0 0.0
        %566 = vmatpush.msra.mxu0 0.0
        %567 = vmatpush.msra.mxu0 0.0
        %568 = vmatpush.msra.mxu0 0.0
        %569 = vmatpush.msra.mxu0 0.0
        %570 = vmatpush.msra.mxu0 %v512
        %571 = vmatmul.f32.gmra.mxu0 %v553
        %v572 = vpop.f32.mrf.mxu0
        %v573 = vadd.f32 0.0, %v572
        %574 = vdwg.mxu0
        %v575 = vld [vmem:[#allocation13] sm:$0xff]
        %v576 = vld [vmem:[#allocation13 + $0x8] sm:$0xff]
        %v578 = vsel %vm513, %v573, 0
        %580 = vmatpush.msra.mxu0 0.0
        %581 = vmatpush.msra.mxu0 0.0
        %582 = vmatpush.msra.mxu0 0.0
        %583 = vmatpush.msra.mxu0 0.0
        %584 = vmatpush.msra.mxu0 0.0
        %585 = vmatpush.msra.mxu0 0.0
        %586 = vmatpush.msra.mxu0 0.0
        %587 = vmatpush.msra.mxu0 0.0
        %588 = vmatpush.msra.mxu0 0.0
        %589 = vmatpush.msra.mxu0 0.0
        %590 = vmatpush.msra.mxu0 0.0
        %591 = vmatpush.msra.mxu0 0.0
        %592 = vmatpush.msra.mxu0 0.0
        %593 = vmatpush.msra.mxu0 0.0
        %594 = vmatpush.msra.mxu0 %v576
        %595 = vmatpush.msra.mxu0 %v575
        %596 = vmatmul.f32.gmra.mxu0 %v578
        %v597 = vpop.f32.mrf.mxu0
        %v598 = vadd.f32 0.0, %v597
        %599 = vdwg.mxu0
        %v600 = vadd.f32 %v509, %v598
        %601 = vrot.lane.b32.xlu0 %v506, 112
        %v602 = vpop.permute.xlu0 %601
        %603 = vrot.lane.b32.xlu0 %v511, 112
        %v604 = vpop.permute.xlu0 %603
        %v605 = vsel %vm513, %v602, 0
        %v607 = vsel %vm513, %v604, 0
        %609 = vmatpush.xpose.msra.mxu0 0.0
        %610 = vmatpush.xpose.msra.mxu0 0.0
        %611 = vmatpush.xpose.msra.mxu0 0.0
        %612 = vmatpush.xpose.msra.mxu0 0.0
        %613 = vmatpush.xpose.msra.mxu0 0.0
        %614 = vmatpush.xpose.msra.mxu0 0.0
        %615 = vmatpush.xpose.msra.mxu0 0.0
        %616 = vmatpush.xpose.msra.mxu0 0.0
        %617 = vmatpush.xpose.msra.mxu0 0.0
        %618 = vmatpush.xpose.msra.mxu0 0.0
        %619 = vmatpush.xpose.msra.mxu0 0.0
        %620 = vmatpush.xpose.msra.mxu0 0.0
        %621 = vmatpush.xpose.msra.mxu0 0.0
        %622 = vmatpush.xpose.msra.mxu0 0.0
        %623 = vmatpush.xpose.msra.mxu0 0.0
        %624 = vmatpush.xpose.msra.mxu0 %v607
        %625 = vmatmul.f32.gmra.mxu0 %v605
        %v626 = vpop.f32.mrf.mxu0
        %v627 = vadd.f32 0.0, %v626
        %628 = vdwg.mxu0
        %v629 = vsel %vm540, %v627, -inf
        %630 = vmax.xlane.f32.xlu0 %v629
        %v631 = vpop.xlane.xlu0 %630
        %v632 = vsub.f32 %v627, %v631
        %v633 = vmul.f32 %v632, 1.442695
        %v634 = vpow.pop %v633
        %v635 = vsel %vm540, %v634, 0.0
        %636 = vadd.xlane.f32.xlu0 %v635
        %v637 = vpop.xlane.xlu0 %636
        %v638 = vrcp.pop %v637
        %v639 = vmul.f32 %v634, %v638
        %641 = vrot.lane.b32.xlu0 %v512, 112
        %v642 = vpop.permute.xlu0 %641
        %v645 = vsel %vm540, %v639, 0
        %647 = vmatpush.msra.mxu0 0.0
        %648 = vmatpush.msra.mxu0 0.0
        %649 = vmatpush.msra.mxu0 0.0
        %650 = vmatpush.msra.mxu0 0.0
        %651 = vmatpush.msra.mxu0 0.0
        %652 = vmatpush.msra.mxu0 0.0
        %653 = vmatpush.msra.mxu0 0.0
        %654 = vmatpush.msra.mxu0 0.0
        %655 = vmatpush.msra.mxu0 0.0
        %656 = vmatpush.msra.mxu0 0.0
        %657 = vmatpush.msra.mxu0 0.0
        %658 = vmatpush.msra.mxu0 0.0
        %659 = vmatpush.msra.mxu0 0.0
        %660 = vmatpush.msra.mxu0 0.0
        %661 = vmatpush.msra.mxu0 0.0
        %662 = vmatpush.msra.mxu0 %v642
        %663 = vmatmul.f32.gmra.mxu0 %v645
        %v664 = vpop.f32.mrf.mxu0
        %v665 = vadd.f32 0.0, %v664
        %666 = vdwg.mxu0
        %v667 = vld [vmem:[#allocation13 + $0x10] sm:$0xff]
        %v668 = vld [vmem:[#allocation13 + $0x18] sm:$0xff]
        %v670 = vsel %vm513, %v665, 0
        %672 = vmatpush.msra.mxu0 0.0
        %673 = vmatpush.msra.mxu0 0.0
        %674 = vmatpush.msra.mxu0 0.0
        %675 = vmatpush.msra.mxu0 0.0
        %676 = vmatpush.msra.mxu0 0.0
        %677 = vmatpush.msra.mxu0 0.0
        %678 = vmatpush.msra.mxu0 0.0
        %679 = vmatpush.msra.mxu0 0.0
        %680 = vmatpush.msra.mxu0 0.0
        %681 = vmatpush.msra.mxu0 0.0
        %682 = vmatpush.msra.mxu0 0.0
        %683 = vmatpush.msra.mxu0 0.0
        %684 = vmatpush.msra.mxu0 0.0
        %685 = vmatpush.msra.mxu0 0.0
        %686 = vmatpush.msra.mxu0 %v668
        %687 = vmatpush.msra.mxu0 %v667
        %688 = vmatmul.f32.gmra.mxu0 %v670
        %v689 = vpop.f32.mrf.mxu0
        %v690 = vadd.f32 0.0, %v689
        %691 = vdwg.mxu0
        %v692 = vadd.f32 %v600, %v690
        %693 = vst [vmem:[%s417] sm:$0xff] %v692
        %s694 = sand.u32 %s210, 1
        %s695 = scalar_lea.sflag [#allocation6], %s694
        %s696 = sand.u32 %s210, 1
        %s697 = smul.addr %s696, 8
        %s698 = scalar_lea.vmem [#allocation15], %s697
        // Predicated region
        $region77: #{tpu_custom_call.1} parent=47 // pred_check
          %p699 = pneg %p220
        $region78: #{tpu_custom_call.1} parent=47 // pred_check_branch
          %701 = sbr.rel (%p699) target = $region80
        $region79: #{tpu_custom_call.1} parent=47 // pred_region
          %703 = vsyncadd %s695, 0
          %s704 = sadd.s32 %s34, %s33
          %s705 = smul.addr %s704, 8
          %s706 = scalar_lea.hbm %s7, %s705
          %s708 = sshll.u32 %s698, 4
          %s709 = int_to_ptr.vmem [resolvable:$true] %s708
          %s710 = sshll.u32 %s706, 4
          %s711 = int_to_ptr.hbm [resolvable:$true] %s710
          %713 = dma.vmem_to_hbm [thread:$0]  %s709, 128, %s711, %s695
        $region80: #{tpu_custom_call.1} parent=47 // pred_fallthru
          _
      $region48: #{tpu_custom_call.1} parent=5 // pred_fallthru
        _
      %p714 = scmp.le.s32.totalorder 2, %s24
      // Predicated region
      $region81: #{tpu_custom_call.1} parent=5 // pred_check
        %p715 = pneg %p714
      $region82: #{tpu_custom_call.1} parent=5 // pred_check_branch
        %717 = sbr.rel (%p715) target = $region84
      $region83: #{tpu_custom_call.1} parent=5 // pred_region
        %s718 = ssub.s32 %s24, 2
        // Predicated region
        $region85: #{tpu_custom_call.1} parent=83 // pred_check
          %p719 = pneg %p226
        $region86: #{tpu_custom_call.1} parent=83 // pred_check_branch
          %721 = sbr.rel (%p719) target = $region88
        $region87: #{tpu_custom_call.1} parent=83 // pred_region
          %s722 = sand.u32 %s211, 1
          %s723 = scalar_lea.sflag [#allocation6], %s722
          %s724 = sand.u32 %s211, 1
          %s725 = smul.addr %s724, 8
          %s726 = scalar_lea.vmem [#allocation15], %s725
          %728 = dma.done %s723, 128
        $region88: #{tpu_custom_call.1} parent=83 // pred_fallthru
          _
      $region84: #{tpu_custom_call.1} parent=5 // pred_fallthru
        _
    $region6: #{tpu_custom_call.1} parent=1 // loop_footer
      %s28 = sadd.s32 1, %s24
    $region7: #{tpu_custom_call.1} parent=1 // loop_footer_branch
      %23 = sbr.rel target = $region3
    $region8: #{tpu_custom_call.1} parent=1 // loop_exit
      _
    %729 = vsyncpa [#allocation5], 1
    %s730 = scalar_lea.sflag [#allocation5], 1
    %731 = vsyncpa %s730, 1
    %732 = vsyncpa [#allocation8], 1
    %s733 = scalar_lea.sflag [#allocation8], 1
    %734 = vsyncpa %s733, 1
    %735 = vsyncpa [#allocation11], 1
    %736 = vsyncpa [#allocation14], 1
    %737 = vsyncpa [#allocation6], 1
    %s738 = scalar_lea.sflag [#allocation6], 1
    %739 = vsyncpa %s738, 1

</llo_original>
